<compile_context>
chip_gen: v5e
topology: v5e:2x2
jax: 0.10.0
libtpu: 0.0.40
codegen_flags: <defaults>
</compile_context>

<pallas_src>
import functools
import math

import jax
import jax.numpy as jnp
from jax.experimental import pallas as pl
from jax.experimental.pallas import tpu as pltpu


LANE = 128
SUBLANE = 8
T_CHUNK = 32                      # LSTM time-chunk (multiple of 8); amortizes grid-step overhead


def _device_kind():
    try:
        return jax.devices()[0].device_kind.lower()
    except Exception:
        return ""


_KIND = _device_kind()
IS_V7X = ("v7" in _KIND) or ("7x" in _KIND)
IS_V5E = "v5" in _KIND
# v7x has 64 MiB physical VMEM -> keep a 32 MiB scoped budget there; v5e/v6e have 128 MiB -> use 64 MiB.
VMEM_LIMIT = (32 if IS_V7X else 64) * 1024 * 1024
# v5e MXU is 128x128: tm=256 only inflates the f32 accumulator / vreg pressure there.
TM_DEFAULT = 128 if IS_V5E else 256


def _round_up(x, m):
    return (x + m - 1) // m * m


# ----------------------------------------------------------------------------
# Tiled linear: X @ W + b (+ optional ReLU).
# Fast path (every call in this model): K fits one tile -> no scratch accumulator, single dot per tile.
# ----------------------------------------------------------------------------
def _linear_nk1_kernel(x_ref, w_ref, b_ref, o_ref, *, activation):
    y = jnp.dot(x_ref[...], w_ref[...], preferred_element_type=jnp.float32) + b_ref[...]
    if activation == "relu":
        y = jnp.maximum(y, 0.0)
    o_ref[...] = y.astype(o_ref.dtype)


def _linear_acc_kernel(x_ref, w_ref, b_ref, o_ref, acc_ref, *, activation, n_k):
    @pl.when(pl.program_id(1) == 0)
    def _init():
        acc_ref[...] = jnp.zeros_like(acc_ref)

    acc_ref[...] += jnp.dot(x_ref[...], w_ref[...], preferred_element_type=jnp.float32)

    @pl.when(pl.program_id(1) == n_k - 1)
    def _finalize():
        y = acc_ref[...] + b_ref[...]
        if activation == "relu":
            y = jnp.maximum(y, 0.0)
        o_ref[...] = y.astype(o_ref.dtype)


def pallas_linear(x, w, b, activation=None, out_dtype=jnp.float32, tm=None, tk=512):
    """x:(M,K), w:(K,N), b:(N,) -> (M,N) in out_dtype.  Rows stream over an M-grid ("parallel");
    K is single-pass when it fits a tile, otherwise streamed into a VMEM accumulator."""
    M, K = x.shape
    N = w.shape[1]
    if tm is None:
        tm = TM_DEFAULT
    tm = min(tm, _round_up(M, SUBLANE))
    Mp = _round_up(M, tm)
    Np = _round_up(N, LANE)
    Kp128 = _round_up(K, LANE)
    bp = jnp.pad(b.astype(jnp.float32), (0, Np - N)).reshape(1, Np)

    if Kp128 <= tk:                                       # n_k == 1 fast path
        xp = jnp.pad(x.astype(jnp.bfloat16), ((0, Mp - M), (0, Kp128 - K)))
        wp = jnp.pad(w.astype(jnp.bfloat16), ((0, Kp128 - K), (0, Np - N)))
        out = pl.pallas_call(
            functools.partial(_linear_nk1_kernel, activation=activation),
            grid=(Mp // tm,),
            in_specs=[pl.BlockSpec((tm, Kp128), lambda i: (i, 0)),
                      pl.BlockSpec((Kp128, Np), lambda i: (0, 0)),
                      pl.BlockSpec((1, Np), lambda i: (0, 0))],
            out_specs=pl.BlockSpec((tm, Np), lambda i: (i, 0)),
            out_shape=jax.ShapeDtypeStruct((Mp, Np), out_dtype),
            compiler_params=pltpu.CompilerParams(
                dimension_semantics=("parallel",), vmem_limit_bytes=VMEM_LIMIT),
        )(xp, wp, bp)
        return out[:M, :N]

    tk = min(tk, Kp128)
    Kp = _round_up(K, tk)
    n_k = Kp // tk
    xp = jnp.pad(x.astype(jnp.bfloat16), ((0, Mp - M), (0, Kp - K)))
    wp = jnp.pad(w.astype(jnp.bfloat16), ((0, Kp - K), (0, Np - N)))
    out = pl.pallas_call(
        functools.partial(_linear_acc_kernel, activation=activation, n_k=n_k),
        grid=(Mp // tm, n_k),
        in_specs=[pl.BlockSpec((tm, tk), lambda i, k: (i, k)),
                  pl.BlockSpec((tk, Np), lambda i, k: (k, 0)),
                  pl.BlockSpec((1, Np), lambda i, k: (0, 0))],
        out_specs=pl.BlockSpec((tm, Np), lambda i, k: (i, 0)),
        out_shape=jax.ShapeDtypeStruct((Mp, Np), out_dtype),
        scratch_shapes=[pltpu.VMEM((tm, Np), jnp.float32)],
        compiler_params=pltpu.CompilerParams(
            dimension_semantics=("parallel", "arbitrary"), vmem_limit_bytes=VMEM_LIMIT),
    )(xp, wp, bp)
    return out[:M, :N]


# ----------------------------------------------------------------------------
# Fused token embedding: packed char-CNN (ONE matmul) + position max + bias/ReLU + highway(x2) + proj.
# The (tn, nf_total) activation never leaves VMEM between the stages.
# ----------------------------------------------------------------------------
def _embed_kernel(x_ref, wcnn_ref, bcnn_ref, wha_ref, bha_ref, whb_ref, bhb_ref,
                  wp_ref, bp_ref, o_ref, *, n_pos, dim):
    # single packed conv matmul: (tn, Kp) @ (Kp, n_pos*dim) -> (tn, n_pos*dim)
    y = jnp.dot(x_ref[...], wcnn_ref[...], preferred_element_type=jnp.float32)
    m = y[:, :dim]
    for p in range(1, n_pos):                             # 128-lane-aligned max reduction over positions
        m = jnp.maximum(m, y[:, p * dim:(p + 1) * dim])
    # bias after the position max is equivalent to conv+bias-then-maxpool only because the bias is
    # position-invariant (AllenNLP char CNN).
    act = jnp.maximum(m + bcnn_ref[...], 0.0)             # (tn, dim) f32
    # highway x2: p = x@W+b; y = g*x + (1-g)*relu(p[:, :dim]); g = sigmoid(p[:, dim:])
    for w_ref, b_ref in ((wha_ref, bha_ref), (whb_ref, bhb_ref)):
        pg = jnp.dot(act.astype(jnp.bfloat16), w_ref[...],
                     preferred_element_type=jnp.float32) + b_ref[...]
        nonlin = jnp.maximum(pg[:, :dim], 0.0)
        gate = jax.nn.sigmoid(pg[:, dim:])
        act = gate * act + (1.0 - gate) * nonlin
    # final projection to the biLM width
    o_ref[...] = (jnp.dot(act.astype(jnp.bfloat16), wp_ref[...],
                          preferred_element_type=jnp.float32) + bp_ref[...]).astype(o_ref.dtype)


def pack_char_cnn(filter_params, filters, char_dim, width, k_pad):
    """Zero-embed every (filter, position) conv weight into one (k_pad, n_pos*dim) matrix whose column
    blocks of width dim are per-position; nonexistent positions duplicate position 0 (max-invariant)."""
    dim = sum(nf for _, nf in filters)
    n_pos = max(width - fs + 1 for fs, _ in filters)
    W = jnp.zeros((k_pad, n_pos * dim), jnp.float32)
    b = jnp.zeros((dim,), jnp.float32)
    col = 0
    for fs, nf in filters:
        w_f, b_f = filter_params[fs]                      # (fs*char_dim, nf), (nf,)
        npos = width - fs + 1
        for p in range(n_pos):
            src = p if p < npos else 0
            W = W.at[src * char_dim:(src + fs) * char_dim,
                     p * dim + col:p * dim + col + nf].set(w_f)
        b = b.at[col:col + nf].set(b_f)
        col += nf
    return W, b


def pallas_token_embed(emb_flat, params, cfg, tn=None):
    N, WC = emb_flat.shape
    dim = sum(nf for _, nf in cfg["filters"])
    n_pos = max(cfg["max_word_len"] - fs + 1 for fs, _ in cfg["filters"])
    P = cfg["projection_dim"]
    assert dim % LANE == 0 and P % LANE == 0, "char-CNN feature count / projection must be 128-aligned"
    Kp = _round_up(WC, LANE)
    Pp = _round_up(P, LANE)
    if tn is None:
        tn = TM_DEFAULT
    tn = min(tn, _round_up(N, SUBLANE))
    Np = _round_up(N, tn)
    xp = jnp.pad(emb_flat.astype(jnp.bfloat16), ((0, Np - N), (0, Kp - WC)))
    (wa, ba), (wb, bb) = params["highway"]
    wp, bp = params["proj"]
    out = pl.pallas_call(
        functools.partial(_embed_kernel, n_pos=n_pos, dim=dim),
        grid=(Np // tn,),
        in_specs=[pl.BlockSpec((tn, Kp), lambda i: (i, 0)),
                  pl.BlockSpec((Kp, n_pos * dim), lambda i: (0, 0)),
                  pl.BlockSpec((1, dim), lambda i: (0, 0)),
                  pl.BlockSpec((dim, 2 * dim), lambda i: (0, 0)),
                  pl.BlockSpec((1, 2 * dim), lambda i: (0, 0)),
                  pl.BlockSpec((dim, 2 * dim), lambda i: (0, 0)),
                  pl.BlockSpec((1, 2 * dim), lambda i: (0, 0)),
                  pl.BlockSpec((dim, Pp), lambda i: (0, 0)),
                  pl.BlockSpec((1, Pp), lambda i: (0, 0))],
        out_specs=pl.BlockSpec((tn, Pp), lambda i: (i, 0)),
        out_shape=jax.ShapeDtypeStruct((Np, Pp), jnp.bfloat16),
        compiler_params=pltpu.CompilerParams(
            dimension_semantics=("parallel",), vmem_limit_bytes=VMEM_LIMIT),
    )(xp,
      params["cnn_w"].astype(jnp.bfloat16),
      params["cnn_b"].astype(jnp.float32).reshape(1, dim),
      wa.astype(jnp.bfloat16), ba.astype(jnp.float32).reshape(1, -1),
      wb.astype(jnp.bfloat16), bb.astype(jnp.float32).reshape(1, -1),
      jnp.pad(wp.astype(jnp.bfloat16), ((0, 0), (0, Pp - P))),
      jnp.pad(bp.astype(jnp.float32), (0, Pp - P)).reshape(1, Pp))
    return out[:N, :P]


# ----------------------------------------------------------------------------
# Masked LSTM recurrence, streamed over T-chunks.
# grid = (direction, T-chunk).  On v7x the direction axis is "parallel" (megacore); on v5e/v6e both
# directions are merged (n_dir=1, hidden=2H, block-diagonal W_hh) so each step is ONE dependent matmul.
# (h, c) persist in VMEM scratch across chunks; input gates are precomputed by pallas_linear so the
# only per-step MXU work is h @ W_hh.  Mask is pre-broadcast to full lane width (pure VPU select).
# ----------------------------------------------------------------------------
def _bilstm_kernel(g_ref, whh_ref, mask_ref, o_ref, h_ref, c_ref, *, hidden, t_chunk):
    @pl.when(pl.program_id(1) == 0)
    def _init():
        h_ref[...] = jnp.zeros_like(h_ref)
        c_ref[...] = jnp.zeros_like(c_ref)

    h = h_ref[...]
    c = c_ref[...]
    whh = whh_ref[0]                                      # (hidden, 4*hidden) bf16, resident
    for t in range(t_chunk):                              # serial recurrence, static unroll
        g = g_ref[0, t].astype(jnp.float32) + jnp.dot(h.astype(jnp.bfloat16), whh,
                                                      preferred_element_type=jnp.float32)
        i = jax.nn.sigmoid(g[:, 0 * hidden:1 * hidden])   # lane-aligned gate slices
        f = jax.nn.sigmoid(g[:, 1 * hidden:2 * hidden])
        u = jnp.tanh(g[:, 2 * hidden:3 * hidden])
        o = jax.nn.sigmoid(g[:, 3 * hidden:4 * hidden])
        c_new = f * c + i * u
        h_new = o * jnp.tanh(c_new)
        m = mask_ref[t]                                   # (B, hidden) pre-broadcast mask
        o_ref[0, t] = (m * h_new).astype(o_ref.dtype)
        h = m * h_new + (1.0 - m) * h
        c = m * c_new + (1.0 - m) * c
    h_ref[...] = h
    c_ref[...] = c


def pallas_bilstm_recurrence(gates2, whh2, mask_b, hidden, t_chunk=T_CHUNK):
    n_dir, Tp, B, G = gates2.shape
    assert hidden % LANE == 0 and G == 4 * hidden
    assert Tp % t_chunk == 0
    return pl.pallas_call(
        functools.partial(_bilstm_kernel, hidden=hidden, t_chunk=t_chunk),
        grid=(n_dir, Tp // t_chunk),
        in_specs=[pl.BlockSpec((1, t_chunk, B, G), lambda d, t: (d, t, 0, 0)),
                  pl.BlockSpec((1, hidden, G), lambda d, t: (d, 0, 0)),
                  pl.BlockSpec((t_chunk, B, hidden), lambda d, t: (t, 0, 0))],
        out_specs=pl.BlockSpec((1, t_chunk, B, hidden), lambda d, t: (d, t, 0, 0)),
        out_shape=jax.ShapeDtypeStruct((n_dir, Tp, B, hidden), jnp.bfloat16),
        scratch_shapes=[pltpu.VMEM((B, hidden), jnp.float32),
                        pltpu.VMEM((B, hidden), jnp.float32)],
        compiler_params=pltpu.CompilerParams(
            dimension_semantics=("parallel", "arbitrary"),
            vmem_limit_bytes=VMEM_LIMIT),
    )(gates2, whh2, mask_b)


def merge_whh(w_f, w_b, H):
    """(H,4H) fwd + (H,4H) bwd -> (2H,8H) block-diagonal recurrent weight with per-gate interleaving
    [i_f,i_b,f_f,f_b,u_f,u_b,o_f,o_b]; hidden layout is [h_f | h_b]."""
    wf = w_f.reshape(H, 4, H)
    wb = w_b.reshape(H, 4, H)
    z = jnp.zeros_like(wf)
    top = jnp.stack([wf, z], axis=2).reshape(H, 8 * H)    # rows for h_f
    bot = jnp.stack([z, wb], axis=2).reshape(H, 8 * H)    # rows for h_b
    return jnp.concatenate([top, bot], axis=0)


# ----------------------------------------------------------------------------
# Fused scalar mix + PositionwiseFeedForwardReduce, batched over representations.
# The softmaxed mix scalars are folded into per-representation copies of W0 (mix is linear before ReLU),
# so the kernel never materializes the mixed tensor:  sum_k L_k @ (s_rk*W0_r) -> ReLU -> @W1_r.
# ----------------------------------------------------------------------------
def _mix_pwff_kernel(*refs, n_layers, kp):
    l_refs = refs[:n_layers]
    w0_ref, b0_ref, w1_ref, b1_ref, o_ref = refs[n_layers:]
    acc = jnp.dot(l_refs[0][...], w0_ref[0, 0:kp, :], preferred_element_type=jnp.float32)
    for k in range(1, n_layers):
        acc += jnp.dot(l_refs[k][...], w0_ref[0, k * kp:(k + 1) * kp, :],
                       preferred_element_type=jnp.float32)
    h = jnp.maximum(acc + b0_ref[0], 0.0)                 # ReLU (dropout = identity in eval)
    o_ref[0] = (jnp.dot(h.astype(jnp.bfloat16), w1_ref[0],
                        preferred_element_type=jnp.float32) + b1_ref[0]).astype(o_ref.dtype)


def pallas_mix_pwff(layer_list, mix_scales, pwff_params, d_e, tm=None):
    n_layers = len(layer_list)
    M, K = layer_list[0].shape
    R = len(pwff_params)
    if tm is None:
        tm = TM_DEFAULT
    tm = min(tm, _round_up(M, SUBLANE))
    Mp = _round_up(M, tm)
    Kp = _round_up(K, LANE)
    Dp = _round_up(d_e, LANE)
    ls = [jnp.pad(l.astype(jnp.bfloat16), ((0, Mp - M), (0, Kp - K))) for l in layer_list]
    w0s, b0s, w1s, b1s = [], [], [], []
    for r in range(R):
        w0, b0, w1, b1 = pwff_params[r]
        w0p = jnp.pad(w0.astype(jnp.float32), ((0, Kp - K), (0, Dp - d_e)))
        w0s.append(jnp.concatenate([mix_scales[r, k] * w0p for k in range(n_layers)], axis=0))
        b0s.append(jnp.pad(b0.astype(jnp.float32), (0, Dp - d_e))[None])
        w1s.append(jnp.pad(w1.astype(jnp.float32), ((0, Dp - d_e), (0, Dp - d_e))))
        b1s.append(jnp.pad(b1.astype(jnp.float32), (0, Dp - d_e))[None])
    W0 = jnp.stack(w0s).astype(jnp.bfloat16)              # (R, n_layers*Kp, Dp)
    B0 = jnp.stack(b0s)                                   # (R, 1, Dp) f32
    W1 = jnp.stack(w1s).astype(jnp.bfloat16)              # (R, Dp, Dp)
    B1 = jnp.stack(b1s)                                   # (R, 1, Dp)
    out = pl.pallas_call(
        functools.partial(_mix_pwff_kernel, n_layers=n_layers, kp=Kp),
        grid=(Mp // tm, R),
        in_specs=[pl.BlockSpec((tm, Kp), lambda i, r: (i, 0)) for _ in range(n_layers)]
                + [pl.BlockSpec((1, n_layers * Kp, Dp), lambda i, r: (r, 0, 0)),
                   pl.BlockSpec((1, 1, Dp), lambda i, r: (r, 0, 0)),
                   pl.BlockSpec((1, Dp, Dp), lambda i, r: (r, 0, 0)),
                   pl.BlockSpec((1, 1, Dp), lambda i, r: (r, 0, 0))],
        out_specs=pl.BlockSpec((1, tm, Dp), lambda i, r: (r, i, 0)),
        out_shape=jax.ShapeDtypeStruct((R, Mp, Dp), jnp.float32),
        compiler_params=pltpu.CompilerParams(
            dimension_semantics=("parallel", "arbitrary"), vmem_limit_bytes=VMEM_LIMIT),
    )(*ls, W0, B0, W1, B1)
    return out[:, :M, :d_e]


# ----------------------------------------------------------------------------
# JAX glue
# ----------------------------------------------------------------------------
def reverse_within_length(x, lengths):
    """Reverse the valid prefix of each sequence (packed-sequence-equivalent reversal)."""
    T = x.shape[1]
    t = jnp.arange(T)[None, :]
    rev = jnp.where(t < lengths[:, None], lengths[:, None] - 1 - t, t)
    return jnp.take_along_axis(x, jnp.broadcast_to(rev[:, :, None], x.shape), axis=1)


def bilstm_layer(x, lp, mask, lengths, merged):
    """One biLSTM layer: a single lane-dense (B*T, D)@(D, 8H) Pallas matmul computes both directions'
    input gates, then the streamed recurrence runs either merged (v5e/v6e) or direction-parallel (v7x)."""
    B, T, _ = x.shape
    H = lp["w_hh"].shape[1]
    gates = pallas_linear(x.reshape(B * T, -1), lp["w_ih"], lp["b"],
                          out_dtype=jnp.bfloat16).reshape(B, T, 8 * H)
    g_f = gates[..., :4 * H]
    g_b = reverse_within_length(gates[..., 4 * H:], lengths)   # positionwise gates -> reverse after
    Tp = _round_up(T, T_CHUNK)
    if merged:
        gm = jnp.stack([g_f.reshape(B, T, 4, H), g_b.reshape(B, T, 4, H)],
                       axis=3).reshape(B, T, 8 * H)             # per-gate interleave [g_f | g_b]
        g2 = jnp.transpose(gm, (1, 0, 2))[None]                 # (1, T, B, 8H)
        g2 = jnp.pad(g2, ((0, 0), (0, Tp - T), (0, 0), (0, 0)))
        whh = merge_whh(lp["w_hh"][0], lp["w_hh"][1], H)[None].astype(jnp.bfloat16)
        hid = 2 * H
    else:
        g2 = jnp.transpose(jnp.stack([g_f, g_b], axis=0), (0, 2, 1, 3))   # (2, T, B, 4H)
        g2 = jnp.pad(g2, ((0, 0), (0, Tp - T), (0, 0), (0, 0)))
        whh = lp["w_hh"].astype(jnp.bfloat16)                   # (2, H, 4H)
        hid = H
    mask_pad = jnp.pad(mask.T, ((0, Tp - T), (0, 0)))           # (Tp, B)
    mask_b = jnp.broadcast_to(mask_pad[:, :, None], (Tp, B, hid)).astype(jnp.float32)
    out = pallas_bilstm_recurrence(g2, whh, mask_b, hidden=hid)
    if merged:
        o = jnp.transpose(out[0], (1, 0, 2))[:, :T]             # (B, T, 2H)
        h_f, h_b = o[..., :H], o[..., H:]
    else:
        o = jnp.transpose(out, (0, 2, 1, 3))[:, :, :T]          # (2, B, T, H)
        h_f, h_b = o[0], o[1]
    return jnp.concatenate([h_f, reverse_within_length(h_b, lengths)], axis=-1)


def elmo_forward(char_ids, params, cfg):
    """ELMo.forward (eval mode): char-CNN token embedding -> 2-layer biLSTM LM -> scalar-mixed
    representations -> PositionwiseFeedForwardReduce per representation (feed_forward=True)."""
    B, T, W = char_ids.shape
    Cd = cfg["char_dim"]
    P = cfg["projection_dim"]
    lengths = jnp.sum(jnp.any(char_ids > 0, axis=-1).astype(jnp.int32), axis=-1)   # (B,)
    mask = (jnp.arange(T)[None, :] < lengths[:, None]).astype(jnp.float32)         # (B, T)

    # token embedding: char embedding gather (XLA) + fused char-CNN/highway/projection (one kernel)
    emb = params["char_emb"][char_ids.reshape(B * T, W)]                 # (B*T, W, Cd)
    tok = pallas_token_embed(emb.reshape(B * T, W * Cd), params, cfg)    # (B*T, P) bf16
    tok = (tok.reshape(B, T, P) * mask[..., None]).astype(jnp.bfloat16)

    # biLM: layer 0 = duplicated token embedding; layers 1..L = biLSTM outputs (zeroed at padding)
    layers = [jnp.concatenate([tok, tok], axis=-1)]
    x = tok
    for lp in params["lstm"]:
        x = bilstm_layer(x, lp, mask, lengths, merged=not IS_V7X)
        layers.append(x)

    # scalar mix + PositionwiseFeedForwardReduce, all representations in one fused pallas_call
    mix_scales = params["mix_g"][:, None] * jax.nn.softmax(params["mix_w"], axis=-1)  # (R, L+1)
    flat_layers = [l.reshape(B * T, 2 * P) for l in layers]
    out = pallas_mix_pwff(flat_layers, mix_scales, params["pwff"], cfg["d_e"])        # (R, B*T, d_e)
    return [out[i].reshape(B, T, cfg["d_e"]) for i in range(cfg["elmo_num"])]


# ----------------------------------------------------------------------------
# Deterministic parameter initialization
# ----------------------------------------------------------------------------
def init_params(key, cfg):
    # TODO(synk): the real ELMo loads pretrained biLM weights from option/weight files; these are
    # deterministic random stand-ins with the same structure.
    ks = iter(jax.random.split(key, 32))
    Cd = cfg["char_dim"]
    W = cfg["max_word_len"]
    P = cfg["projection_dim"]
    H = P
    nf_total = sum(nf for _, nf in cfg["filters"])
    p = {}
    tab = jax.random.normal(next(ks), (cfg["char_vocab_size"], Cd), jnp.float32) * 0.5
    p["char_emb"] = tab.at[0].set(0.0)                                    # padding char id 0
    filt = {fs: (jax.random.normal(next(ks), (fs * Cd, nf), jnp.float32) / math.sqrt(fs * Cd),
                 jax.random.normal(next(ks), (nf,), jnp.float32) * 0.1)
            for fs, nf in cfg["filters"]}
    p["cnn_w"], p["cnn_b"] = pack_char_cnn(filt, cfg["filters"], Cd, W, _round_up(W * Cd, LANE))
    p["highway"] = [(jax.random.normal(next(ks), (nf_total, 2 * nf_total), jnp.float32) / math.sqrt(nf_total),
                     jnp.concatenate([jnp.zeros((nf_total,), jnp.float32),
                                      jnp.ones((nf_total,), jnp.float32)]))
                    for _ in range(2)]
    p["proj"] = (jax.random.normal(next(ks), (nf_total, P), jnp.float32) / math.sqrt(nf_total),
                 jnp.zeros((P,), jnp.float32))
    lstm = []
    for layer in range(cfg["num_lstm_layers"]):
        d_in = P if layer == 0 else 2 * H
        s = 1.0 / math.sqrt(H)

        def u(k, shape):
            return jax.random.uniform(k, shape, jnp.float32, -s, s)

        lstm.append(dict(
            w_ih=u(next(ks), (d_in, 8 * H)),                  # [fwd(i,f,u,o) | bwd(i,f,u,o)] input gates
            w_hh=jnp.stack([u(next(ks), (H, 4 * H)), u(next(ks), (H, 4 * H))], axis=0),
            b=u(next(ks), (8 * H,)),                          # plays the role of b_ih + b_hh
        ))
    p["lstm"] = lstm
    p["mix_w"] = jax.random.normal(next(ks), (cfg["elmo_num"], cfg["num_lstm_layers"] + 1), jnp.float32) * 0.1
    p["mix_g"] = jnp.ones((cfg["elmo_num"],), jnp.float32)
    pwff = []
    for _ in range(cfg["elmo_num"]):
        pwff.append((jax.random.normal(next(ks), (2 * P, cfg["d_e"]), jnp.float32) / math.sqrt(2 * P),
                     jnp.zeros((cfg["d_e"],), jnp.float32),
                     jax.random.normal(next(ks), (cfg["d_e"], cfg["d_e"]), jnp.float32) / math.sqrt(cfg["d_e"]),
                     jnp.zeros((cfg["d_e"],), jnp.float32)))
    p["pwff"] = pwff
    return p


# ----------------------------------------------------------------------------
# Main
# ----------------------------------------------------------------------------
if __name__ == "__main__":
    CFG = dict(
        char_vocab_size=64,
        char_dim=8,
        max_word_len=8,
        filters=((1, 32), (2, 32), (3, 64)),   # 128 char-CNN feature maps total (lane-dense)
        projection_dim=128,                    # per-direction biLM width -> elmo_dim = 256
        num_lstm_layers=2,
        elmo_num=2,                            # args.elmo_num representations
        d_e=128,                               # PositionwiseFeedForwardReduce width (args.d_e)
    )
    B, T, W = 2, 16, CFG["max_word_len"]

    key = jax.random.PRNGKey(0)
    k_ids, k_par = jax.random.split(key)
    # TODO(synk): batch_to_ids (AllenNLP host-side string->char-id tokenizer) has no Pallas
    # equivalent; the forward takes its padded char-id output directly.
    char_ids = jax.random.randint(k_ids, (B, T, W), 1, CFG["char_vocab_size"], jnp.int32)
    char_ids = char_ids.at[1, 11:, :].set(0)   # sequence 1 zero-padded to length 11

    params = init_params(k_par, CFG)

    # sanity check 1: tiled linear, single-K fast path and K-accumulator path (exercises padding paths)
    xs = jax.random.normal(jax.random.PRNGKey(1), (37, 200), jnp.float32)
    ws = jax.random.normal(jax.random.PRNGKey(2), (200, 96), jnp.float32) * 0.1
    bs = jax.random.normal(jax.random.PRNGKey(3), (96,), jnp.float32)
    ref = jnp.maximum(xs @ ws + bs, 0.0)
    got1 = pallas_linear(xs, ws, bs, activation="relu")
    got2 = pallas_linear(xs, ws, bs, activation="relu", tk=128)
    assert jnp.allclose(got1, ref, atol=5e-2, rtol=5e-2), "pallas_linear (single-K) mismatch"
    assert jnp.allclose(got2, ref, atol=5e-2, rtol=5e-2), "pallas_linear (K-tiled) mismatch"

    # sanity check 2: merged block-diagonal LSTM recurrence == direction-grid recurrence
    kt = jax.random.split(jax.random.PRNGKey(4), 3)
    Ht, Bt, Tt = 128, 2, T_CHUNK
    g_f = (jax.random.normal(kt[0], (Tt, Bt, 4 * Ht), jnp.float32) * 0.5).astype(jnp.bfloat16)
    g_b = (jax.random.normal(kt[1], (Tt, Bt, 4 * Ht), jnp.float32) * 0.5).astype(jnp.bfloat16)
    whh_t = jax.random.normal(kt[2], (2, Ht, 4 * Ht), jnp.float32) * 0.05
    msk = (jnp.arange(Tt)[:, None] < jnp.array([Tt, Tt - 5])[None, :]).astype(jnp.float32)
    out_dir = pallas_bilstm_recurrence(
        jnp.stack([g_f, g_b], axis=0), whh_t.astype(jnp.bfloat16),
        jnp.broadcast_to(msk[:, :, None], (Tt, Bt, Ht)), hidden=Ht)
    gm = jnp.stack([g_f.reshape(Tt, Bt, 4, Ht).astype(jnp.float32),
                    g_b.reshape(Tt, Bt, 4, Ht).astype(jnp.float32)], axis=3)
    gm = gm.reshape(Tt, Bt, 8 * Ht).astype(jnp.bfloat16)[None]
    out_m = pallas_bilstm_recurrence(
        gm, merge_whh(whh_t[0], whh_t[1], Ht)[None].astype(jnp.bfloat16),
        jnp.broadcast_to(msk[:, :, None], (Tt, Bt, 2 * Ht)), hidden=2 * Ht)
    assert jnp.allclose(out_dir[0].astype(jnp.float32), out_m[0, :, :, :Ht].astype(jnp.float32),
                        atol=5e-2), "merged/dir recurrence mismatch (fwd)"
    assert jnp.allclose(out_dir[1].astype(jnp.float32), out_m[0, :, :, Ht:].astype(jnp.float32),
                        atol=5e-2), "merged/dir recurrence mismatch (bwd)"

    @jax.jit
    def run(p, ids):
        return elmo_forward(ids, p, CFG)

    reps = jax.block_until_ready(run(params, char_ids))
    assert len(reps) == CFG["elmo_num"]
    for r in reps:
        assert r.shape == (B, T, CFG["d_e"])
        assert bool(jnp.all(jnp.isfinite(r)))
    print("KERNEL_OK")
</pallas_src>

<mosaic_0001>
module attributes {stable_mosaic.version = 11 : i64} {
  func.func @_linear_nk1_kernel(%arg0: i32, %arg1: memref<40x256xbf16, #tpu.memory_space<vmem>>, %arg2: memref<256x128xbf16, #tpu.memory_space<vmem>>, %arg3: memref<1x128xf32, #tpu.memory_space<vmem>>, %arg4: memref<40x128xf32, #tpu.memory_space<vmem>>) attributes {dimension_semantics = [#tpu.dimension_semantics<parallel>], iteration_bounds = array<i64: 1>, scalar_prefetch = 0 : i64, scratch_operands = 0 : i64, tpu.core_type = #tpu.core_type<tc>, window_params = [{transform_indices = @transform_0, window_bounds = array<i64: 40, 256>}, {pipeline_mode = #tpu.pipeline_mode<synchronous>, transform_indices = @transform_1, window_bounds = array<i64: 256, 128>}, {pipeline_mode = #tpu.pipeline_mode<synchronous>, transform_indices = @transform_2, window_bounds = array<i64: 1, 128>}, {transform_indices = @transform_3, window_bounds = array<i64: 40, 128>}]} {
    %c0 = arith.constant 0 : index
    %c0_0 = arith.constant 0 : index
    %0 = vector.load %arg1[%c0, %c0_0] : memref<40x256xbf16, #tpu.memory_space<vmem>>, vector<40x256xbf16>
    %c0_1 = arith.constant 0 : index
    %c0_2 = arith.constant 0 : index
    %1 = vector.load %arg2[%c0_1, %c0_2] : memref<256x128xbf16, #tpu.memory_space<vmem>>, vector<256x128xbf16>
    %cst = arith.constant dense<0.000000e+00> : vector<40x128xf32>
    %2 = tpu.matmul %0, %1, %cst {dimension_numbers = #tpu.dot_dimension_numbers<[1], [0], [0], [1], [0, 0, 1, 1], [], []>} : vector<40x256xbf16>, vector<256x128xbf16>, vector<40x128xf32> -> vector<40x128xf32>
    %c0_3 = arith.constant 0 : index
    %c0_4 = arith.constant 0 : index
    %3 = vector.load %arg3[%c0_3, %c0_4] : memref<1x128xf32, #tpu.memory_space<vmem>>, vector<1x128xf32>
    %4 = vector.broadcast %3 : vector<1x128xf32> to vector<40x128xf32>
    %5 = arith.addf %2, %4 : vector<40x128xf32>
    %cst_5 = arith.constant 0.000000e+00 : f32
    %6 = vector.broadcast %cst_5 : f32 to vector<40x128xf32>
    %7 = arith.maximumf %5, %6 : vector<40x128xf32>
    %c0_6 = arith.constant 0 : index
    %c0_7 = arith.constant 0 : index
    %8 = vector.load %arg4[%c0_6, %c0_7] : memref<40x128xf32, #tpu.memory_space<vmem>>, vector<40x128xf32>
    tpu.vector_store %arg4[%c0_6, %c0_7], %7 {strides = array<i32>} : memref<40x128xf32, #tpu.memory_space<vmem>>, vector<40x128xf32>,
    return
  }
  func.func @transform_0(%arg0: i32) -> (i32, i32) {
    %c0_i32 = arith.constant 0 : i32
    %c0_i32_0 = arith.constant 0 : i32
    return %arg0, %c0_i32 : i32, i32
  }
  func.func @transform_1(%arg0: i32) -> (i32, i32) {
    %c0_i32 = arith.constant 0 : i32
    %c0_i32_0 = arith.constant 0 : i32
    %c0_i32_1 = arith.constant 0 : i32
    return %c0_i32, %c0_i32_0 : i32, i32
  }
  func.func @transform_2(%arg0: i32) -> (i32, i32) {
    %c0_i32 = arith.constant 0 : i32
    %c0_i32_0 = arith.constant 0 : i32
    %c0_i32_1 = arith.constant 0 : i32
    return %c0_i32, %c0_i32_0 : i32, i32
  }
  func.func @transform_3(%arg0: i32) -> (i32, i32) {
    %c0_i32 = arith.constant 0 : i32
    %c0_i32_0 = arith.constant 0 : i32
    return %arg0, %c0_i32 : i32, i32
  }
}

</mosaic_0001>

<llo_original>
// kernel: tpu_custom_call.1
$region0: #{tpu_custom_call.1}
  #allocation0 [shape = 'u32[]', space=smem, size = 0x4, offset = 0x4, fixed_abs, tag = 'smem constant byte address 0x4 - core index']
  #allocation1 [shape = 'u32[72,128]{1,0:T(1,128)}', space=vmem, size = 0x9000, scoped, tag = 'internal scratch']
  %s0 = inlined_call_operand.hbm [shape: bf16[40,256], index: 0, kind: input, shape index: {}]
  %s1 = inlined_call_operand.hbm [shape: bf16[256,128], index: 1, kind: input, shape index: {}]
  %s2 = inlined_call_operand.vmem [shape: f32[1,128], index: 2, kind: input, shape index: {}]
  %s3 = inlined_call_operand.hbm [shape: f32[40,128], index: 3, kind: output, shape index: {}]
  %s4 = sld [smem:[#allocation0]]
  $region30: #{tpu_custom_call.1} parent=0
    _
  %s6 = ssub.s32 1, %s4
  %s7 = scalar_select 0, %s6, %s4
  $region1: #{tpu_custom_call.1} parent=0
    #allocation2 [shape = 'u8[20480]{0}', space=vmem, size = 0x5000, scoped, tag = 'input window, operand 0, single buffered']
    #allocation3 [shape = 's32[1]{0}', space=sflag, size = 0x4, scoped, tag = 'scoped memory for tpu_custom_call.1']
    #allocation4 [shape = 's32[1]{0}', space=sflag, size = 0x4, scoped, tag = 'scoped memory for tpu_custom_call.1']
    #allocation5 [shape = 'u8[65536]{0}', space=vmem, size = 0x10000, scoped, tag = 'input window, operand 1, single buffered']
    #allocation6 [shape = 's32[1]{0}', space=sflag, size = 0x4, scoped, tag = 'scoped memory for tpu_custom_call.1']
    #allocation7 [shape = 'u8[20480]{0}', space=vmem, size = 0x5000, scoped, tag = 'output window, operand 0, single buffered']
    %8 = vsyncpa [#allocation3], 0
    %9 = vsyncpa [#allocation6], 0
    %10 = vsyncpa [#allocation4], 0
    // Predicated region
    $region2: #{tpu_custom_call.1} parent=1 // pred_check
      _
    $region3: #{tpu_custom_call.1} parent=1 // pred_check_branch
      %12 = sbr.rel (0) target = $region5
    $region4: #{tpu_custom_call.1} parent=1 // pred_region
      %14 = vsyncadd [#allocation3], 0
      %s15 = sshll.u32 %s0, 4
      %s16 = int_to_ptr.hbm [resolvable:$true] %s15
      %s17 = sshll.u32 [#allocation2], 4
      %s18 = int_to_ptr.vmem [resolvable:$true] %s17
      %23 = dma.hbm_to_vmem [thread:$0]  %s16, 640, %s18, [#allocation3], 128, 128, 8
    $region5: #{tpu_custom_call.1} parent=1 // pred_fallthru
      _
    // Predicated region
    $region6: #{tpu_custom_call.1} parent=1 // pred_check
      _
    $region7: #{tpu_custom_call.1} parent=1 // pred_check_branch
      %25 = sbr.rel (0) target = $region9
    $region8: #{tpu_custom_call.1} parent=1 // pred_region
      %27 = vsyncadd [#allocation6], 0
      %s28 = sshll.u32 %s1, 4
      %s29 = int_to_ptr.hbm [resolvable:$true] %s28
      %s30 = sshll.u32 [#allocation5], 4
      %s31 = int_to_ptr.vmem [resolvable:$true] %s30
      %36 = dma.hbm_to_vmem [thread:$0]  %s29, 2048, %s31, [#allocation6], 64, 64, 4
    $region9: #{tpu_custom_call.1} parent=1 // pred_fallthru
      _
    // Predicated region
    $region10: #{tpu_custom_call.1} parent=1 // pred_check
      _
    $region11: #{tpu_custom_call.1} parent=1 // pred_check_branch
      %38 = sbr.rel (0) target = $region13
    $region12: #{tpu_custom_call.1} parent=1 // pred_region
      _
    $region13: #{tpu_custom_call.1} parent=1 // pred_fallthru
      _
    // Predicated region
    $region14: #{tpu_custom_call.1} parent=1 // pred_check
      _
    $region15: #{tpu_custom_call.1} parent=1 // pred_check_branch
      %40 = sbr.rel (0) target = $region17
    $region16: #{tpu_custom_call.1} parent=1 // pred_region
      %42 = dma.done [#allocation3], 640
    $region17: #{tpu_custom_call.1} parent=1 // pred_fallthru
      _
    // Predicated region
    $region18: #{tpu_custom_call.1} parent=1 // pred_check
      _
    $region19: #{tpu_custom_call.1} parent=1 // pred_check_branch
      %44 = sbr.rel (0) target = $region21
    $region20: #{tpu_custom_call.1} parent=1 // pred_region
      %46 = dma.done [#allocation6], 2048
    $region21: #{tpu_custom_call.1} parent=1 // pred_fallthru
      _
    %v47 = vld [vmem:[#allocation2] sm:$0xff]
    %v48 = vld [vmem:[#allocation2 + $0x8] sm:$0xff]
    %v49 = vld [vmem:[#allocation2 + $0x10] sm:$0xff]
    %v50 = vld [vmem:[#allocation2 + $0x18] sm:$0xff]
    %v51 = vld [vmem:[#allocation2 + $0x20] sm:$0xff]
    %v52 = vld [vmem:[#allocation5] sm:$0xf]
    %v53 = vld [vmem:[#allocation5 + $0x4] sm:$0xf]
    %v54 = vld [vmem:[#allocation5 + $0x8] sm:$0xf]
    %v55 = vld [vmem:[#allocation5 + $0xc] sm:$0xf]
    %v56 = vld [vmem:[#allocation5 + $0x10] sm:$0xf]
    %v57 = vld [vmem:[#allocation5 + $0x14] sm:$0xf]
    %v58 = vld [vmem:[#allocation5 + $0x18] sm:$0xf]
    %v59 = vld [vmem:[#allocation5 + $0x1c] sm:$0xf]
    %v60 = vld [vmem:[#allocation5 + $0x20] sm:$0xf]
    %v61 = vld [vmem:[#allocation5 + $0x24] sm:$0xf]
    %v62 = vld [vmem:[#allocation5 + $0x28] sm:$0xf]
    %v63 = vld [vmem:[#allocation5 + $0x2c] sm:$0xf]
    %v64 = vld [vmem:[#allocation5 + $0x30] sm:$0xf]
    %v65 = vld [vmem:[#allocation5 + $0x34] sm:$0xf]
    %v66 = vld [vmem:[#allocation5 + $0x38] sm:$0xf]
    %v67 = vld [vmem:[#allocation5 + $0x3c] sm:$0xf]
    %v68 = vld [vmem:[#allocation5 + $0x40] sm:$0xf]
    %v69 = vld [vmem:[#allocation5 + $0x44] sm:$0xf]
    %v70 = vld [vmem:[#allocation5 + $0x48] sm:$0xf]
    %v71 = vld [vmem:[#allocation5 + $0x4c] sm:$0xf]
    %v72 = vld [vmem:[#allocation5 + $0x50] sm:$0xf]
    %v73 = vld [vmem:[#allocation5 + $0x54] sm:$0xf]
    %v74 = vld [vmem:[#allocation5 + $0x58] sm:$0xf]
    %v75 = vld [vmem:[#allocation5 + $0x5c] sm:$0xf]
    %v76 = vld [vmem:[#allocation5 + $0x60] sm:$0xf]
    %v77 = vld [vmem:[#allocation5 + $0x64] sm:$0xf]
    %v78 = vld [vmem:[#allocation5 + $0x68] sm:$0xf]
    %v79 = vld [vmem:[#allocation5 + $0x6c] sm:$0xf]
    %v80 = vld [vmem:[#allocation5 + $0x70] sm:$0xf]
    %v81 = vld [vmem:[#allocation5 + $0x74] sm:$0xf]
    %v82 = vld [vmem:[#allocation5 + $0x78] sm:$0xf]
    %v83 = vld [vmem:[#allocation5 + $0x7c] sm:$0xf]
    %v84 = vld [vmem:[%s2] sm:$0x1]
    %v86 = vperm.slane %v84, 0
    %v93 = vunpack.c.l.b16 %v47
    %v94 = vunpack.c.h.b16 %v47
    %v95 = vunpack.c.l.b16 %v48
    %v96 = vunpack.c.h.b16 %v48
    %v97 = vunpack.c.l.b16 %v49
    %v98 = vunpack.c.h.b16 %v49
    %v99 = vunpack.c.l.b16 %v50
    %v100 = vunpack.c.h.b16 %v50
    %v101 = vunpack.c.l.b16 %v51
    %v102 = vunpack.c.h.b16 %v51
    %v103 = vpack.c.b16 %v95, %v93
    %v104 = vpack.c.b16 %v96, %v94
    %v105 = vpack.c.b16 %v99, %v97
    %v106 = vpack.c.b16 %v100, %v98
    %v107 = vpack.c.b16 %v101, %v101
    %v108 = vpack.c.b16 %v102, %v102
    %v147 = vunpack.c.l.b16 %v52
    %v148 = vunpack.c.l.b16 %v53
    %v149 = vunpack.c.l.b16 %v54
    %v150 = vunpack.c.l.b16 %v55
    %v151 = vunpack.c.l.b16 %v56
    %v152 = vunpack.c.l.b16 %v57
    %v153 = vunpack.c.l.b16 %v58
    %v154 = vunpack.c.l.b16 %v59
    %v155 = vunpack.c.l.b16 %v60
    %v156 = vunpack.c.l.b16 %v61
    %v157 = vunpack.c.l.b16 %v62
    %v158 = vunpack.c.l.b16 %v63
    %v159 = vunpack.c.l.b16 %v64
    %v160 = vunpack.c.l.b16 %v65
    %v161 = vunpack.c.l.b16 %v66
    %v162 = vunpack.c.l.b16 %v67
    %v163 = vunpack.c.l.b16 %v68
    %v164 = vunpack.c.l.b16 %v69
    %v165 = vunpack.c.l.b16 %v70
    %v166 = vunpack.c.l.b16 %v71
    %v167 = vunpack.c.l.b16 %v72
    %v168 = vunpack.c.l.b16 %v73
    %v169 = vunpack.c.l.b16 %v74
    %v170 = vunpack.c.l.b16 %v75
    %v171 = vunpack.c.l.b16 %v76
    %v172 = vunpack.c.l.b16 %v77
    %v173 = vunpack.c.l.b16 %v78
    %v174 = vunpack.c.l.b16 %v79
    %v175 = vunpack.c.l.b16 %v80
    %v176 = vunpack.c.l.b16 %v81
    %v177 = vunpack.c.l.b16 %v82
    %v178 = vunpack.c.l.b16 %v83
    %v179 = vpack.c.b16 %v148, %v147
    %v180 = vpack.c.b16 %v150, %v149
    %v181 = vpack.c.b16 %v152, %v151
    %v182 = vpack.c.b16 %v154, %v153
    %v183 = vpack.c.b16 %v156, %v155
    %v184 = vpack.c.b16 %v158, %v157
    %v185 = vpack.c.b16 %v160, %v159
    %v186 = vpack.c.b16 %v162, %v161
    %v187 = vpack.c.b16 %v164, %v163
    %v188 = vpack.c.b16 %v166, %v165
    %v189 = vpack.c.b16 %v168, %v167
    %v190 = vpack.c.b16 %v170, %v169
    %v191 = vpack.c.b16 %v172, %v171
    %v192 = vpack.c.b16 %v174, %v173
    %v193 = vpack.c.b16 %v176, %v175
    %v194 = vpack.c.b16 %v178, %v177
    %211 = vmatpush.bf16.msra.mxu0 %v186
    %212 = vmatpush.bf16.msra.mxu0 %v185
    %213 = vmatpush.bf16.msra.mxu0 %v184
    %214 = vmatpush.bf16.msra.mxu0 %v183
    %215 = vmatpush.bf16.msra.mxu0 %v182
    %216 = vmatpush.bf16.msra.mxu0 %v181
    %217 = vmatpush.bf16.msra.mxu0 %v180
    %218 = vmatpush.bf16.msra.mxu0 %v179
    %219 = vmatmul.bf16.gmra.mxu0 %v103
    %v220 = vpop.f32.mrf.mxu0
    %v221 = vadd.f32 %v86, %v220
    %v222 = vpop.f32.mrf.mxu0
    %v223 = vadd.f32 %v86, %v222
    %224 = vmatmul.bf16.gmra.mxu0 %v105
    %v225 = vpop.f32.mrf.mxu0
    %v226 = vadd.f32 %v86, %v225
    %v227 = vpop.f32.mrf.mxu0
    %v228 = vadd.f32 %v86, %v227
    %229 = vmatmul.bf16.gmra.mxu0 %v107
    %v230 = vpop.f32.mrf.mxu0
    %v231 = vadd.f32 %v86, %v230
    %v232 = vpop.f32.mrf.mxu0
    %233 = vdwg.mxu0
    %234 = vmatpush.bf16.msra.mxu0 %v194
    %235 = vmatpush.bf16.msra.mxu0 %v193
    %236 = vmatpush.bf16.msra.mxu0 %v192
    %237 = vmatpush.bf16.msra.mxu0 %v191
    %238 = vmatpush.bf16.msra.mxu0 %v190
    %239 = vmatpush.bf16.msra.mxu0 %v189
    %240 = vmatpush.bf16.msra.mxu0 %v188
    %241 = vmatpush.bf16.msra.mxu0 %v187
    %242 = vmatmul.bf16.gmra.mxu0 %v104
    %v243 = vpop.f32.mrf.mxu0
    %v244 = vadd.f32 %v221, %v243
    %v245 = vpop.f32.mrf.mxu0
    %v246 = vadd.f32 %v223, %v245
    %247 = vmatmul.bf16.gmra.mxu0 %v106
    %v248 = vpop.f32.mrf.mxu0
    %v249 = vadd.f32 %v226, %v248
    %v250 = vpop.f32.mrf.mxu0
    %v251 = vadd.f32 %v228, %v250
    %252 = vmatmul.bf16.gmra.mxu0 %v108
    %v253 = vpop.f32.mrf.mxu0
    %v254 = vadd.f32 %v231, %v253
    %v255 = vpop.f32.mrf.mxu0
    %256 = vdwg.mxu0
    %v257 = vmax.f32 %v244, 0.0
    %v258 = vmax.f32 %v246, 0.0
    %v259 = vmax.f32 %v249, 0.0
    %v260 = vmax.f32 %v251, 0.0
    %v261 = vmax.f32 %v254, 0.0
    %262 = vst [vmem:[#allocation7] sm:$0xff] %v257
    %263 = vst [vmem:[#allocation7 + $0x8] sm:$0xff] %v258
    %264 = vst [vmem:[#allocation7 + $0x10] sm:$0xff] %v259
    %265 = vst [vmem:[#allocation7 + $0x18] sm:$0xff] %v260
    %266 = vst [vmem:[#allocation7 + $0x20] sm:$0xff] %v261
    // Predicated region
    $region22: #{tpu_custom_call.1} parent=1 // pred_check
      _
    $region23: #{tpu_custom_call.1} parent=1 // pred_check_branch
      %268 = sbr.rel (0) target = $region25
    $region24: #{tpu_custom_call.1} parent=1 // pred_region
      %270 = vsyncadd [#allocation4], 0
      %s271 = sshll.u32 [#allocation7], 4
      %s272 = int_to_ptr.vmem [resolvable:$true] %s271
      %s273 = sshll.u32 %s3, 4
      %s274 = int_to_ptr.hbm [resolvable:$true] %s273
      %279 = dma.vmem_to_hbm [thread:$0]  %s272, 640, %s274, [#allocation4], 128, 128, 8
    $region25: #{tpu_custom_call.1} parent=1 // pred_fallthru
      _
    // Predicated region
    $region26: #{tpu_custom_call.1} parent=1 // pred_check
      _
    $region27: #{tpu_custom_call.1} parent=1 // pred_check_branch
      %281 = sbr.rel (0) target = $region29
    $region28: #{tpu_custom_call.1} parent=1 // pred_region
      %283 = dma.done [#allocation4], 640
    $region29: #{tpu_custom_call.1} parent=1 // pred_fallthru
      _
    %284 = vsyncpa [#allocation3], 1
    %285 = vsyncpa [#allocation6], 1
    %286 = vsyncpa [#allocation4], 1

</llo_original>
